<compile_context>
chip_gen: v5e
topology: v5e:2x2
jax: 0.10.0
libtpu: 0.0.40
codegen_flags: <defaults>
</compile_context>

<pallas_src>
import functools

import jax
import jax.numpy as jnp
from jax import lax
from jax.experimental import pallas as pl
from jax.experimental.pallas import tpu as pltpu


def _round_up(v, m):
    return (v + m - 1) // m * m


def _pick_tile(padded, prefer=256, base=128):
    # padded is always a multiple of `base`.
    return prefer if padded % prefer == 0 else base


def _similarity_kernel(x_ref, y_ref, o_ref, xnorm_ref, *, inv_temp, eps):
    j = pl.program_id(1)

    # The x tile is constant across the j sweep (j is the inner, "arbitrary"
    # grid axis) -> compute its row norms once and cache them in scratch.
    @pl.when(j == 0)
    def _():
        xf = x_ref[...].astype(jnp.float32)                       # (tm, D)
        xnorm_ref[...] = jnp.sqrt(jnp.sum(xf * xf, axis=-1, keepdims=True))

    x = x_ref[...].astype(jnp.float32)                            # (tm, D)
    y = y_ref[...].astype(jnp.float32)                            # (tn, D)

    # Pairwise dot products on the MXU.  NT contraction (both operands keep D
    # on the lane axis) -> no materialized transpose of y.
    dots = lax.dot_general(
        x, y,
        dimension_numbers=(((1,), (1,)), ((), ())),
        preferred_element_type=jnp.float32)                       # (tm, tn)

    # y row norms as a lane vector (1, tn): reshape of the lane reduction
    # instead of transposing a (tn, 1) column.
    y_norm = jnp.sqrt(jnp.sum(y * y, axis=-1)).reshape(1, -1)     # (1, tn)

    # cos = dot / max(||x|| * ||y||, eps); fold 1/temp into a single EUP
    # approx reciprocal + one VPU multiply (no divides).
    denom = jnp.maximum(xnorm_ref[...] * y_norm, eps)             # (tm, tn)
    scale = pl.reciprocal(denom, approx=True) * inv_temp
    o_ref[...] = (dots * scale).astype(o_ref.dtype)


def similarity(x, y, temp, eps=1e-8):
    """Pairwise cosine similarity divided by temperature.

    x: (N, D), y: (M, D) -> (N, M) float32
    """
    n, d = x.shape
    m, d2 = y.shape
    assert d == d2, "feature dims must match"

    # --- pad to TPU-friendly shapes (zeros do not affect dots or norms; the
    #     padded output rows/cols are sliced off afterwards). ---------------
    d_pad = _round_up(d, 128)                 # lane axis of the inputs
    m_pad = _round_up(m, 128)                 # lane axis of the output
    tn = _pick_tile(m_pad)

    if n >= 128:
        n_pad = _round_up(n, 128)
        tm = _pick_tile(n_pad)
        n_pad = _round_up(n_pad, tm)
    else:
        tm = _round_up(n, 8)                  # sublane-aligned single tile
        n_pad = tm

    if (n_pad, d_pad) != (n, d):
        x = jnp.pad(x, ((0, n_pad - n), (0, d_pad - d)))
    if (m_pad, d_pad) != (m, d):
        y = jnp.pad(y, ((0, m_pad - m), (0, d_pad - d)))

    grid = (n_pad // tm, m_pad // tn)

    # Rough double-buffered footprint; cap at 64 MiB so the tiling is v7x-safe.
    tile_bytes = 4 * (2 * tm * d_pad + 2 * tn * d_pad + 2 * tm * tn + tm)
    vmem_limit = min(max(tile_bytes + (4 << 20), 32 << 20), 64 << 20)

    kernel = functools.partial(
        _similarity_kernel, inv_temp=float(1.0 / temp), eps=float(eps))

    out_pad = pl.pallas_call(
        kernel,
        out_shape=jax.ShapeDtypeStruct((n_pad, m_pad), jnp.float32),
        grid_spec=pltpu.PrefetchScalarGridSpec(
            num_scalar_prefetch=0,
            grid=grid,
            in_specs=[
                pl.BlockSpec((tm, d_pad), lambda i, j: (i, 0)),
                pl.BlockSpec((tn, d_pad), lambda i, j: (j, 0)),
            ],
            out_specs=pl.BlockSpec((tm, tn), lambda i, j: (i, j)),
            scratch_shapes=[pltpu.VMEM((tm, 1), jnp.float32)],
        ),
        compiler_params=pltpu.CompilerParams(
            # i axis is independent -> shard across TensorCores; j must stay
            # sequential ("arbitrary") because the x-norm scratch is filled at
            # j == 0 and reused across the j sweep.
            dimension_semantics=("parallel", "arbitrary"),
            vmem_limit_bytes=vmem_limit,
        ),
    )(x, y)

    return out_pad[:n, :m]


if __name__ == "__main__":
    key = jax.random.PRNGKey(0)
    kx, ky = jax.random.split(key)

    # Small shapes consistent with the forward: a batch of sentence embeddings.
    N, M, D = 8, 8, 32
    temp = 0.05

    x = jax.random.normal(kx, (N, D), dtype=jnp.float32)
    y = jax.random.normal(ky, (M, D), dtype=jnp.float32)

    out = similarity(x, y, temp)
    out = jax.block_until_ready(out)

    # Pure-JAX reference check (PyTorch CosineSimilarity documented formula).
    eps = 1e-8
    dots = x @ y.T
    denom = jnp.maximum(
        jnp.linalg.norm(x, axis=-1, keepdims=True)
        * jnp.linalg.norm(y, axis=-1, keepdims=True).T,
        eps,
    )
    ref = dots / denom / temp

    assert out.shape == (N, M)
    # Tolerance accounts for the approx (EUP) reciprocal; values span ~[-20, 20].
    assert jnp.allclose(out, ref, atol=1e-2, rtol=1e-2), (
        "mismatch vs reference: max abs diff = "
        f"{float(jnp.max(jnp.abs(out - ref)))}")

    print("KERNEL_OK")
</pallas_src>

<mosaic_0001>
module attributes {stable_mosaic.version = 11 : i64} {
  func.func @_similarity_kernel(%arg0: i32, %arg1: i32, %arg2: memref<8x128xf32, #tpu.memory_space<vmem>>, %arg3: memref<128x128xf32, #tpu.memory_space<vmem>>, %arg4: memref<8x128xf32, #tpu.memory_space<vmem>>, %arg5: memref<8x1xf32, #tpu.memory_space<vmem>>) attributes {dimension_semantics = [#tpu.dimension_semantics<parallel>, #tpu.dimension_semantics<arbitrary>], iteration_bounds = array<i64: 1, 1>, scalar_prefetch = 0 : i64, scratch_operands = 1 : i64, tpu.core_type = #tpu.core_type<tc>, window_params = [{transform_indices = @transform_0, window_bounds = array<i64: 8, 128>}, {transform_indices = @transform_1, window_bounds = array<i64: 128, 128>}, {transform_indices = @transform_2, window_bounds = array<i64: 8, 128>}]} {
    %c0_i32 = arith.constant 0 : i32
    %0 = arith.cmpi eq, %arg1, %c0_i32 : i32
    %1 = arith.extui %0 : i1 to i32
    %c0_i32_0 = arith.constant 0 : i32
    %2 = arith.cmpi ne, %1, %c0_i32_0 : i32
    scf.if %2 {
      %c0_11 = arith.constant 0 : index
      %c0_12 = arith.constant 0 : index
      %21 = vector.load %arg2[%c0_11, %c0_12] : memref<8x128xf32, #tpu.memory_space<vmem>>, vector<8x128xf32>
      %22 = arith.mulf %21, %21 : vector<8x128xf32>
      %cst_13 = arith.constant dense<0.000000e+00> : vector<8xf32>
      %23 = vector.multi_reduction <add>, %22, %cst_13 [1] : vector<8x128xf32> to vector<8xf32>
      %24 = vector.shape_cast %23 : vector<8xf32> to vector<8x1xf32>
      %25 = math.sqrt %24 : vector<8x1xf32>
      %c0_14 = arith.constant 0 : index
      %c0_15 = arith.constant 0 : index
      %26 = vector.load %arg5[%c0_14, %c0_15] : memref<8x1xf32, #tpu.memory_space<vmem>>, vector<8x1xf32>
      tpu.vector_store %arg5[%c0_14, %c0_15], %25 {strides = array<i32>} : memref<8x1xf32, #tpu.memory_space<vmem>>, vector<8x1xf32>,
    } else {
    }
    %c0 = arith.constant 0 : index
    %c0_1 = arith.constant 0 : index
    %3 = vector.load %arg2[%c0, %c0_1] : memref<8x128xf32, #tpu.memory_space<vmem>>, vector<8x128xf32>
    %c0_2 = arith.constant 0 : index
    %c0_3 = arith.constant 0 : index
    %4 = vector.load %arg3[%c0_2, %c0_3] : memref<128x128xf32, #tpu.memory_space<vmem>>, vector<128x128xf32>
    %cst = arith.constant dense<0.000000e+00> : vector<8x128xf32>
    %5 = tpu.matmul %3, %4, %cst {dimension_numbers = #tpu.dot_dimension_numbers<[1], [1], [0], [0], [0, 0, 1, 0], [], []>} : vector<8x128xf32>, vector<128x128xf32>, vector<8x128xf32> -> vector<8x128xf32>
    %6 = arith.mulf %4, %4 : vector<128x128xf32>
    %cst_4 = arith.constant dense<0.000000e+00> : vector<128xf32>
    %7 = vector.multi_reduction <add>, %6, %cst_4 [1] : vector<128x128xf32> to vector<128xf32>
    %8 = math.sqrt %7 : vector<128xf32>
    %9 = vector.shape_cast %8 : vector<128xf32> to vector<1x128xf32>
    %c0_5 = arith.constant 0 : index
    %c0_6 = arith.constant 0 : index
    %10 = vector.load %arg5[%c0_5, %c0_6] : memref<8x1xf32, #tpu.memory_space<vmem>>, vector<8x1xf32>
    %11 = vector.broadcast %10 : vector<8x1xf32> to vector<8x128xf32>
    %12 = vector.broadcast %9 : vector<1x128xf32> to vector<8x128xf32>
    %13 = arith.mulf %11, %12 : vector<8x128xf32>
    %cst_7 = arith.constant 9.99999993E-9 : f32
    %14 = vector.broadcast %cst_7 : f32 to vector<8x128xf32>
    %15 = arith.maximumf %13, %14 : vector<8x128xf32>
    %16 = tpu.reciprocal %15 {approx = true} : vector<8x128xf32> -> vector<8x128xf32>
    %cst_8 = arith.constant 2.000000e+01 : f32
    %17 = vector.broadcast %cst_8 : f32 to vector<8x128xf32>
    %18 = arith.mulf %16, %17 : vector<8x128xf32>
    %19 = arith.mulf %5, %18 : vector<8x128xf32>
    %c0_9 = arith.constant 0 : index
    %c0_10 = arith.constant 0 : index
    %20 = vector.load %arg4[%c0_9, %c0_10] : memref<8x128xf32, #tpu.memory_space<vmem>>, vector<8x128xf32>
    tpu.vector_store %arg4[%c0_9, %c0_10], %19 {strides = array<i32>} : memref<8x128xf32, #tpu.memory_space<vmem>>, vector<8x128xf32>,
    return
  }
  func.func @transform_0(%arg0: i32, %arg1: i32) -> (i32, i32) {
    %c0_i32 = arith.constant 0 : i32
    %c0_i32_0 = arith.constant 0 : i32
    return %arg0, %c0_i32 : i32, i32
  }
  func.func @transform_1(%arg0: i32, %arg1: i32) -> (i32, i32) {
    %c0_i32 = arith.constant 0 : i32
    %c0_i32_0 = arith.constant 0 : i32
    return %arg1, %c0_i32 : i32, i32
  }
  func.func @transform_2(%arg0: i32, %arg1: i32) -> (i32, i32) {
    %c0_i32 = arith.constant 0 : i32
    return %arg0, %arg1 : i32, i32
  }
}

</mosaic_0001>

<llo_original>
// kernel: tpu_custom_call.1
$region0: #{tpu_custom_call.1}
  #allocation0 [shape = 'u32[]', space=smem, size = 0x4, offset = 0x4, fixed_abs, tag = 'smem constant byte address 0x4 - core index']
  #allocation1 [shape = 'u32[72,128]{1,0:T(1,128)}', space=vmem, size = 0x9000, scoped, tag = 'internal scratch']
  #allocation2 [shape = 'f32[8,1]{1,0:T(8,128)}', space=vmem, size = 0x1000, scoped, tag = 'scratch operand']
  %s0 = inlined_call_operand.hbm [shape: f32[8,128], index: 0, kind: input, shape index: {}]
  %s1 = inlined_call_operand.hbm [shape: f32[128,128], index: 1, kind: input, shape index: {}]
  %s2 = inlined_call_operand.hbm [shape: f32[8,128], index: 2, kind: output, shape index: {}]
  %s3 = sld [smem:[#allocation0]]
  $region30: #{tpu_custom_call.1} parent=0
    _
  %s5 = ssub.s32 1, %s3
  %s6 = scalar_select 0, %s5, %s3
  $region1: #{tpu_custom_call.1} parent=0
    #allocation3 [shape = 'u8[4096]{0}', space=vmem, size = 0x1000, scoped, tag = 'input window, operand 0, single buffered']
    #allocation4 [shape = 's32[1]{0}', space=sflag, size = 0x4, scoped, tag = 'scoped memory for tpu_custom_call.1']
    #allocation5 [shape = 's32[1]{0}', space=sflag, size = 0x4, scoped, tag = 'scoped memory for tpu_custom_call.1']
    #allocation6 [shape = 'u8[65536]{0}', space=vmem, size = 0x10000, scoped, tag = 'input window, operand 1, single buffered']
    #allocation7 [shape = 's32[1]{0}', space=sflag, size = 0x4, scoped, tag = 'scoped memory for tpu_custom_call.1']
    #allocation8 [shape = 'u8[4096]{0}', space=vmem, size = 0x1000, scoped, tag = 'output window, operand 0, single buffered']
    %7 = vsyncpa [#allocation4], 0
    %8 = vsyncpa [#allocation7], 0
    %9 = vsyncpa [#allocation5], 0
    // Predicated region
    $region2: #{tpu_custom_call.1} parent=1 // pred_check
      _
    $region3: #{tpu_custom_call.1} parent=1 // pred_check_branch
      %11 = sbr.rel (0) target = $region5
    $region4: #{tpu_custom_call.1} parent=1 // pred_region
      %13 = vsyncadd [#allocation4], 0
      %s15 = sshll.u32 %s0, 4
      %s16 = int_to_ptr.hbm [resolvable:$true] %s15
      %s17 = sshll.u32 [#allocation3], 4
      %s18 = int_to_ptr.vmem [resolvable:$true] %s17
      %20 = dma.hbm_to_vmem [thread:$0]  %s16, 128, %s18, [#allocation4]
    $region5: #{tpu_custom_call.1} parent=1 // pred_fallthru
      _
    // Predicated region
    $region6: #{tpu_custom_call.1} parent=1 // pred_check
      _
    $region7: #{tpu_custom_call.1} parent=1 // pred_check_branch
      %22 = sbr.rel (0) target = $region9
    $region8: #{tpu_custom_call.1} parent=1 // pred_region
      %24 = vsyncadd [#allocation7], 0
      %s25 = sshll.u32 %s1, 4
      %s26 = int_to_ptr.hbm [resolvable:$true] %s25
      %s27 = sshll.u32 [#allocation6], 4
      %s28 = int_to_ptr.vmem [resolvable:$true] %s27
      %33 = dma.hbm_to_vmem [thread:$0]  %s26, 2048, %s28, [#allocation7], 128, 128, 8
    $region9: #{tpu_custom_call.1} parent=1 // pred_fallthru
      _
    // Predicated region
    $region10: #{tpu_custom_call.1} parent=1 // pred_check
      _
    $region11: #{tpu_custom_call.1} parent=1 // pred_check_branch
      %35 = sbr.rel (0) target = $region13
    $region12: #{tpu_custom_call.1} parent=1 // pred_region
      %37 = dma.done [#allocation4], 128
    $region13: #{tpu_custom_call.1} parent=1 // pred_fallthru
      _
    // Predicated region
    $region14: #{tpu_custom_call.1} parent=1 // pred_check
      _
    $region15: #{tpu_custom_call.1} parent=1 // pred_check_branch
      %39 = sbr.rel (0) target = $region17
    $region16: #{tpu_custom_call.1} parent=1 // pred_region
      %41 = dma.done [#allocation7], 2048
    $region17: #{tpu_custom_call.1} parent=1 // pred_fallthru
      _
    %p42 = scmp.eq.s32.totalorder 0, 0
    // Predicated region
    $region18: #{tpu_custom_call.1} parent=1 // pred_check
      %p43 = pneg %p42
    $region19: #{tpu_custom_call.1} parent=1 // pred_check_branch
      %45 = sbr.rel (%p43) target = $region21
    $region20: #{tpu_custom_call.1} parent=1 // pred_region
      %v46 = vld [vmem:[#allocation3] sm:$0xff]
      %v47 = vmul.f32 %v46, %v46
      %48 = vadd.xlane.f32.xlu0 %v47
      %v49 = vpop.xlane.xlu0 %48
      %v50 = vrsqrt.pop %v49
      %v51 = vmul.f32 %v50, %v49
      %v52 = vmul.f32 %v51, %v50
      %v53 = vmul.f32 0.5, %v52
      %v54 = vsub.f32 1.5, %v53
      %v55 = vmul.f32 %v50, %v54
      %v56 = vmul.f32 %v49, %v55
      %vm57 = vcmp.eq.f32.partialorder %v49, inf
      %v58 = vsel %vm57, %v49, %v56
      %vm59 = vcmp.eq.f32.partialorder %v49, 0.0
      %v60 = vand.u32 %v49, 2147483648
      %v61 = vsel %vm59, %v60, %v58
      %vm62 = vcmask 7168
      %63 = vst.msk [vmem:[#allocation2] sm:$0xff] %vm62, %v61
    $region21: #{tpu_custom_call.1} parent=1 // pred_fallthru
      _
    %v64 = vld [vmem:[#allocation3] sm:$0xff]
    %v65 = vld [vmem:[#allocation6] sm:$0xff]
    %v66 = vld [vmem:[#allocation6 + $0x8] sm:$0xff]
    %v67 = vld [vmem:[#allocation6 + $0x10] sm:$0xff]
    %v68 = vld [vmem:[#allocation6 + $0x18] sm:$0xff]
    %v69 = vld [vmem:[#allocation6 + $0x20] sm:$0xff]
    %v70 = vld [vmem:[#allocation6 + $0x28] sm:$0xff]
    %v71 = vld [vmem:[#allocation6 + $0x30] sm:$0xff]
    %v72 = vld [vmem:[#allocation6 + $0x38] sm:$0xff]
    %v73 = vld [vmem:[#allocation6 + $0x40] sm:$0xff]
    %v74 = vld [vmem:[#allocation6 + $0x48] sm:$0xff]
    %v75 = vld [vmem:[#allocation6 + $0x50] sm:$0xff]
    %v76 = vld [vmem:[#allocation6 + $0x58] sm:$0xff]
    %v77 = vld [vmem:[#allocation6 + $0x60] sm:$0xff]
    %v78 = vld [vmem:[#allocation6 + $0x68] sm:$0xff]
    %v79 = vld [vmem:[#allocation6 + $0x70] sm:$0xff]
    %v80 = vld [vmem:[#allocation6 + $0x78] sm:$0xff]
    %81 = vmatpush.xpose.msra.mxu0 %v80
    %82 = vmatpush.xpose.msra.mxu0 %v79
    %83 = vmatpush.xpose.msra.mxu0 %v78
    %84 = vmatpush.xpose.msra.mxu0 %v77
    %85 = vmatpush.xpose.msra.mxu0 %v76
    %86 = vmatpush.xpose.msra.mxu0 %v75
    %87 = vmatpush.xpose.msra.mxu0 %v74
    %88 = vmatpush.xpose.msra.mxu0 %v73
    %89 = vmatpush.xpose.msra.mxu0 %v72
    %90 = vmatpush.xpose.msra.mxu0 %v71
    %91 = vmatpush.xpose.msra.mxu0 %v70
    %92 = vmatpush.xpose.msra.mxu0 %v69
    %93 = vmatpush.xpose.msra.mxu0 %v68
    %94 = vmatpush.xpose.msra.mxu0 %v67
    %95 = vmatpush.xpose.msra.mxu0 %v66
    %96 = vmatpush.xpose.msra.mxu0 %v65
    %97 = vmatmul.f32.gmra.mxu0 %v64
    %v98 = vpop.f32.mrf.mxu0
    %v99 = vadd.f32 0.0, %v98
    %100 = vdwg.mxu0
    %v101 = vmul.f32 %v65, %v65
    %v102 = vmul.f32 %v66, %v66
    %v103 = vmul.f32 %v67, %v67
    %v104 = vmul.f32 %v68, %v68
    %v105 = vmul.f32 %v69, %v69
    %v106 = vmul.f32 %v70, %v70
    %v107 = vmul.f32 %v71, %v71
    %v108 = vmul.f32 %v72, %v72
    %v109 = vmul.f32 %v73, %v73
    %v110 = vmul.f32 %v74, %v74
    %v111 = vmul.f32 %v75, %v75
    %v112 = vmul.f32 %v76, %v76
    %v113 = vmul.f32 %v77, %v77
    %v114 = vmul.f32 %v78, %v78
    %v115 = vmul.f32 %v79, %v79
    %v116 = vmul.f32 %v80, %v80
    %117 = vadd.xlane.f32.xlu0 %v101
    %v118 = vpop.xlane.xlu0 %117
    %119 = vadd.xlane.f32.xlu0 %v102
    %v120 = vpop.xlane.xlu0 %119
    %121 = vadd.xlane.f32.xlu0 %v103
    %v122 = vpop.xlane.xlu0 %121
    %123 = vadd.xlane.f32.xlu0 %v104
    %v124 = vpop.xlane.xlu0 %123
    %125 = vadd.xlane.f32.xlu0 %v105
    %v126 = vpop.xlane.xlu0 %125
    %127 = vadd.xlane.f32.xlu0 %v106
    %v128 = vpop.xlane.xlu0 %127
    %129 = vadd.xlane.f32.xlu0 %v107
    %v130 = vpop.xlane.xlu0 %129
    %131 = vadd.xlane.f32.xlu0 %v108
    %v132 = vpop.xlane.xlu0 %131
    %133 = vadd.xlane.f32.xlu0 %v109
    %v134 = vpop.xlane.xlu0 %133
    %135 = vadd.xlane.f32.xlu0 %v110
    %v136 = vpop.xlane.xlu0 %135
    %137 = vadd.xlane.f32.xlu0 %v111
    %v138 = vpop.xlane.xlu0 %137
    %139 = vadd.xlane.f32.xlu0 %v112
    %v140 = vpop.xlane.xlu0 %139
    %141 = vadd.xlane.f32.xlu0 %v113
    %v142 = vpop.xlane.xlu0 %141
    %143 = vadd.xlane.f32.xlu0 %v114
    %v144 = vpop.xlane.xlu0 %143
    %145 = vadd.xlane.f32.xlu0 %v115
    %v146 = vpop.xlane.xlu0 %145
    %147 = vadd.xlane.f32.xlu0 %v116
    %v148 = vpop.xlane.xlu0 %147
    %v149 = vrsqrt.pop %v118
    %v150 = vmul.f32 %v149, %v118
    %v151 = vmul.f32 %v150, %v149
    %v152 = vmul.f32 0.5, %v151
    %v153 = vsub.f32 1.5, %v152
    %v154 = vmul.f32 %v149, %v153
    %v155 = vmul.f32 %v118, %v154
    %vm156 = vcmp.eq.f32.partialorder %v118, inf
    %v157 = vsel %vm156, %v118, %v155
    %vm158 = vcmp.eq.f32.partialorder %v118, 0.0
    %v159 = vand.u32 %v118, 2147483648
    %v160 = vsel %vm158, %v159, %v157
    %v161 = vrsqrt.pop %v120
    %v162 = vmul.f32 %v161, %v120
    %v163 = vmul.f32 %v162, %v161
    %v164 = vmul.f32 0.5, %v163
    %v165 = vsub.f32 1.5, %v164
    %v166 = vmul.f32 %v161, %v165
    %v167 = vmul.f32 %v120, %v166
    %vm168 = vcmp.eq.f32.partialorder %v120, inf
    %v169 = vsel %vm168, %v120, %v167
    %vm170 = vcmp.eq.f32.partialorder %v120, 0.0
    %v171 = vand.u32 %v120, 2147483648
    %v172 = vsel %vm170, %v171, %v169
    %v173 = vrsqrt.pop %v122
    %v174 = vmul.f32 %v173, %v122
    %v175 = vmul.f32 %v174, %v173
    %v176 = vmul.f32 0.5, %v175
    %v177 = vsub.f32 1.5, %v176
    %v178 = vmul.f32 %v173, %v177
    %v179 = vmul.f32 %v122, %v178
    %vm180 = vcmp.eq.f32.partialorder %v122, inf
    %v181 = vsel %vm180, %v122, %v179
    %vm182 = vcmp.eq.f32.partialorder %v122, 0.0
    %v183 = vand.u32 %v122, 2147483648
    %v184 = vsel %vm182, %v183, %v181
    %v185 = vrsqrt.pop %v124
    %v186 = vmul.f32 %v185, %v124
    %v187 = vmul.f32 %v186, %v185
    %v188 = vmul.f32 0.5, %v187
    %v189 = vsub.f32 1.5, %v188
    %v190 = vmul.f32 %v185, %v189
    %v191 = vmul.f32 %v124, %v190
    %vm192 = vcmp.eq.f32.partialorder %v124, inf
    %v193 = vsel %vm192, %v124, %v191
    %vm194 = vcmp.eq.f32.partialorder %v124, 0.0
    %v195 = vand.u32 %v124, 2147483648
    %v196 = vsel %vm194, %v195, %v193
    %v197 = vrsqrt.pop %v126
    %v198 = vmul.f32 %v197, %v126
    %v199 = vmul.f32 %v198, %v197
    %v200 = vmul.f32 0.5, %v199
    %v201 = vsub.f32 1.5, %v200
    %v202 = vmul.f32 %v197, %v201
    %v203 = vmul.f32 %v126, %v202
    %vm204 = vcmp.eq.f32.partialorder %v126, inf
    %v205 = vsel %vm204, %v126, %v203
    %vm206 = vcmp.eq.f32.partialorder %v126, 0.0
    %v207 = vand.u32 %v126, 2147483648
    %v208 = vsel %vm206, %v207, %v205
    %v209 = vrsqrt.pop %v128
    %v210 = vmul.f32 %v209, %v128
    %v211 = vmul.f32 %v210, %v209
    %v212 = vmul.f32 0.5, %v211
    %v213 = vsub.f32 1.5, %v212
    %v214 = vmul.f32 %v209, %v213
    %v215 = vmul.f32 %v128, %v214
    %vm216 = vcmp.eq.f32.partialorder %v128, inf
    %v217 = vsel %vm216, %v128, %v215
    %vm218 = vcmp.eq.f32.partialorder %v128, 0.0
    %v219 = vand.u32 %v128, 2147483648
    %v220 = vsel %vm218, %v219, %v217
    %v221 = vrsqrt.pop %v130
    %v222 = vmul.f32 %v221, %v130
    %v223 = vmul.f32 %v222, %v221
    %v224 = vmul.f32 0.5, %v223
    %v225 = vsub.f32 1.5, %v224
    %v226 = vmul.f32 %v221, %v225
    %v227 = vmul.f32 %v130, %v226
    %vm228 = vcmp.eq.f32.partialorder %v130, inf
    %v229 = vsel %vm228, %v130, %v227
    %vm230 = vcmp.eq.f32.partialorder %v130, 0.0
    %v231 = vand.u32 %v130, 2147483648
    %v232 = vsel %vm230, %v231, %v229
    %v233 = vrsqrt.pop %v132
    %v234 = vmul.f32 %v233, %v132
    %v235 = vmul.f32 %v234, %v233
    %v236 = vmul.f32 0.5, %v235
    %v237 = vsub.f32 1.5, %v236
    %v238 = vmul.f32 %v233, %v237
    %v239 = vmul.f32 %v132, %v238
    %vm240 = vcmp.eq.f32.partialorder %v132, inf
    %v241 = vsel %vm240, %v132, %v239
    %vm242 = vcmp.eq.f32.partialorder %v132, 0.0
    %v243 = vand.u32 %v132, 2147483648
    %v244 = vsel %vm242, %v243, %v241
    %v245 = vrsqrt.pop %v134
    %v246 = vmul.f32 %v245, %v134
    %v247 = vmul.f32 %v246, %v245
    %v248 = vmul.f32 0.5, %v247
    %v249 = vsub.f32 1.5, %v248
    %v250 = vmul.f32 %v245, %v249
    %v251 = vmul.f32 %v134, %v250
    %vm252 = vcmp.eq.f32.partialorder %v134, inf
    %v253 = vsel %vm252, %v134, %v251
    %vm254 = vcmp.eq.f32.partialorder %v134, 0.0
    %v255 = vand.u32 %v134, 2147483648
    %v256 = vsel %vm254, %v255, %v253
    %v257 = vrsqrt.pop %v136
    %v258 = vmul.f32 %v257, %v136
    %v259 = vmul.f32 %v258, %v257
    %v260 = vmul.f32 0.5, %v259
    %v261 = vsub.f32 1.5, %v260
    %v262 = vmul.f32 %v257, %v261
    %v263 = vmul.f32 %v136, %v262
    %vm264 = vcmp.eq.f32.partialorder %v136, inf
    %v265 = vsel %vm264, %v136, %v263
    %vm266 = vcmp.eq.f32.partialorder %v136, 0.0
    %v267 = vand.u32 %v136, 2147483648
    %v268 = vsel %vm266, %v267, %v265
    %v269 = vrsqrt.pop %v138
    %v270 = vmul.f32 %v269, %v138
    %v271 = vmul.f32 %v270, %v269
    %v272 = vmul.f32 0.5, %v271
    %v273 = vsub.f32 1.5, %v272
    %v274 = vmul.f32 %v269, %v273
    %v275 = vmul.f32 %v138, %v274
    %vm276 = vcmp.eq.f32.partialorder %v138, inf
    %v277 = vsel %vm276, %v138, %v275
    %vm278 = vcmp.eq.f32.partialorder %v138, 0.0
    %v279 = vand.u32 %v138, 2147483648
    %v280 = vsel %vm278, %v279, %v277
    %v281 = vrsqrt.pop %v140
    %v282 = vmul.f32 %v281, %v140
    %v283 = vmul.f32 %v282, %v281
    %v284 = vmul.f32 0.5, %v283
    %v285 = vsub.f32 1.5, %v284
    %v286 = vmul.f32 %v281, %v285
    %v287 = vmul.f32 %v140, %v286
    %vm288 = vcmp.eq.f32.partialorder %v140, inf
    %v289 = vsel %vm288, %v140, %v287
    %vm290 = vcmp.eq.f32.partialorder %v140, 0.0
    %v291 = vand.u32 %v140, 2147483648
    %v292 = vsel %vm290, %v291, %v289
    %v293 = vrsqrt.pop %v142
    %v294 = vmul.f32 %v293, %v142
    %v295 = vmul.f32 %v294, %v293
    %v296 = vmul.f32 0.5, %v295
    %v297 = vsub.f32 1.5, %v296
    %v298 = vmul.f32 %v293, %v297
    %v299 = vmul.f32 %v142, %v298
    %vm300 = vcmp.eq.f32.partialorder %v142, inf
    %v301 = vsel %vm300, %v142, %v299
    %vm302 = vcmp.eq.f32.partialorder %v142, 0.0
    %v303 = vand.u32 %v142, 2147483648
    %v304 = vsel %vm302, %v303, %v301
    %v305 = vrsqrt.pop %v144
    %v306 = vmul.f32 %v305, %v144
    %v307 = vmul.f32 %v306, %v305
    %v308 = vmul.f32 0.5, %v307
    %v309 = vsub.f32 1.5, %v308
    %v310 = vmul.f32 %v305, %v309
    %v311 = vmul.f32 %v144, %v310
    %vm312 = vcmp.eq.f32.partialorder %v144, inf
    %v313 = vsel %vm312, %v144, %v311
    %vm314 = vcmp.eq.f32.partialorder %v144, 0.0
    %v315 = vand.u32 %v144, 2147483648
    %v316 = vsel %vm314, %v315, %v313
    %v317 = vrsqrt.pop %v146
    %v318 = vmul.f32 %v317, %v146
    %v319 = vmul.f32 %v318, %v317
    %v320 = vmul.f32 0.5, %v319
    %v321 = vsub.f32 1.5, %v320
    %v322 = vmul.f32 %v317, %v321
    %v323 = vmul.f32 %v146, %v322
    %vm324 = vcmp.eq.f32.partialorder %v146, inf
    %v325 = vsel %vm324, %v146, %v323
    %vm326 = vcmp.eq.f32.partialorder %v146, 0.0
    %v327 = vand.u32 %v146, 2147483648
    %v328 = vsel %vm326, %v327, %v325
    %v329 = vrsqrt.pop %v148
    %v330 = vmul.f32 %v329, %v148
    %v331 = vmul.f32 %v330, %v329
    %v332 = vmul.f32 0.5, %v331
    %v333 = vsub.f32 1.5, %v332
    %v334 = vmul.f32 %v329, %v333
    %v335 = vmul.f32 %v148, %v334
    %vm336 = vcmp.eq.f32.partialorder %v148, inf
    %v337 = vsel %vm336, %v148, %v335
    %vm338 = vcmp.eq.f32.partialorder %v148, 0.0
    %v339 = vand.u32 %v148, 2147483648
    %v340 = vsel %vm338, %v339, %v337
    %v341 = vld [vmem:[#allocation2] sm:$0xff]
    %343 = vset.pattern.permute.xlu0 0
    %344 = vperm.xlu0 %343, %v341
    %v345 = vpop.permute.xlu0 %344
    %v363 = vlaneseq
    %v364 = vand.u32 %v363, 127
    %v365 = vperm.slane %v160, %v364
    %v366 = vadd.s32 %v364, 4294967288
    %v367 = vperm.slane %v172, %v366
    %vm368 = vcmask 130112
    %v369 = vsel %vm368, %v367, %v365
    %v370 = vadd.s32 %v364, 4294967280
    %v371 = vperm.slane %v184, %v370
    %vm372 = vcmask 195712
    %v373 = vsel %vm372, %v371, %v369
    %v374 = vadd.s32 %v364, 4294967272
    %v375 = vperm.slane %v196, %v374
    %vm376 = vcmask 261312
    %v377 = vsel %vm376, %v375, %v373
    %v378 = vadd.s32 %v364, 4294967264
    %v379 = vperm.slane %v208, %v378
    %vm380 = vcmask 326912
    %v381 = vsel %vm380, %v379, %v377
    %v382 = vadd.s32 %v364, 4294967256
    %v383 = vperm.slane %v220, %v382
    %vm384 = vcmask 392512
    %v385 = vsel %vm384, %v383, %v381
    %v386 = vadd.s32 %v364, 4294967248
    %v387 = vperm.slane %v232, %v386
    %vm388 = vcmask 458112
    %v389 = vsel %vm388, %v387, %v385
    %v390 = vadd.s32 %v364, 4294967240
    %v391 = vperm.slane %v244, %v390
    %vm392 = vcmask 523712
    %v393 = vsel %vm392, %v391, %v389
    %v394 = vadd.s32 %v364, 4294967232
    %v395 = vperm.slane %v256, %v394
    %vm396 = vcmask 589312
    %v397 = vsel %vm396, %v395, %v393
    %v398 = vadd.s32 %v364, 4294967224
    %v399 = vperm.slane %v268, %v398
    %vm400 = vcmask 654912
    %v401 = vsel %vm400, %v399, %v397
    %v402 = vadd.s32 %v364, 4294967216
    %v403 = vperm.slane %v280, %v402
    %vm404 = vcmask 720512
    %v405 = vsel %vm404, %v403, %v401
    %v406 = vadd.s32 %v364, 4294967208
    %v407 = vperm.slane %v292, %v406
    %vm408 = vcmask 786112
    %v409 = vsel %vm408, %v407, %v405
    %v410 = vadd.s32 %v364, 4294967200
    %v411 = vperm.slane %v304, %v410
    %vm412 = vcmask 851712
    %v413 = vsel %vm412, %v411, %v409
    %v414 = vadd.s32 %v364, 4294967192
    %v415 = vperm.slane %v316, %v414
    %vm416 = vcmask 917312
    %v417 = vsel %vm416, %v415, %v413
    %v418 = vadd.s32 %v364, 4294967184
    %v419 = vperm.slane %v328, %v418
    %vm420 = vcmask 982912
    %v421 = vsel %vm420, %v419, %v417
    %v422 = vadd.s32 %v364, 4294967176
    %v423 = vperm.slane %v340, %v422
    %vm424 = vcmask 1048512
    %v425 = vsel %vm424, %v423, %v421
    %vm426 = vcmask 1042434
    %v427 = vsel %vm426, %v425, %v425
    %vm428 = vcmask 1043459
    %v429 = vsel %vm428, %v425, %v427
    %vm430 = vcmask 1044484
    %v431 = vsel %vm430, %v425, %v429
    %vm432 = vcmask 1045509
    %v433 = vsel %vm432, %v425, %v431
    %vm434 = vcmask 1046534
    %v435 = vsel %vm434, %v425, %v433
    %vm436 = vcmask 1047559
    %v437 = vsel %vm436, %v425, %v435
    %v439 = vmul.f32 %v345, %v437
    %v440 = vmax.f32 %v439, 1e-08
    %v441 = vrcp.pop %v440
    %v442 = vmul.f32 %v441, 20.0
    %v443 = vmul.f32 %v99, %v442
    %444 = vst [vmem:[#allocation8] sm:$0xff] %v443
    // Predicated region
    $region22: #{tpu_custom_call.1} parent=1 // pred_check
      _
    $region23: #{tpu_custom_call.1} parent=1 // pred_check_branch
      %446 = sbr.rel (0) target = $region25
    $region24: #{tpu_custom_call.1} parent=1 // pred_region
      %448 = vsyncadd [#allocation5], 0
      %s450 = sshll.u32 [#allocation8], 4
      %s451 = int_to_ptr.vmem [resolvable:$true] %s450
      %s452 = sshll.u32 %s2, 4
      %s453 = int_to_ptr.hbm [resolvable:$true] %s452
      %455 = dma.vmem_to_hbm [thread:$0]  %s451, 128, %s453, [#allocation5]
    $region25: #{tpu_custom_call.1} parent=1 // pred_fallthru
      _
    // Predicated region
    $region26: #{tpu_custom_call.1} parent=1 // pred_check
      _
    $region27: #{tpu_custom_call.1} parent=1 // pred_check_branch
      %457 = sbr.rel (0) target = $region29
    $region28: #{tpu_custom_call.1} parent=1 // pred_region
      %459 = dma.done [#allocation5], 128
    $region29: #{tpu_custom_call.1} parent=1 // pred_fallthru
      _
    %460 = vsyncpa [#allocation4], 1
    %461 = vsyncpa [#allocation7], 1
    %462 = vsyncpa [#allocation5], 1

</llo_original>
